<compile_context>
chip_gen: v6e
topology: v6e:2x2x1
jax: 0.10.0
libtpu: 0.0.40
codegen_flags: <defaults>
</compile_context>

<pallas_src>
import functools

import jax
import jax.numpy as jnp
from jax.experimental import pallas as pl
from jax.experimental.pallas import tpu as pltpu


# ----------------------------- Pallas kernel -------------------------------

def _stem_fused_kernel(p_ref, w_ref, b_ref, o_ref, *, nt, ho, wo, cout, hout,
                       decimate_h):
    # p_ref: (M, Kp) bf16 im2col patches, M = nt*ho*wo, rows ordered (n,t,h,w)
    # w_ref: (Kp, Cout) bf16 conv weights with BN scale folded in
    # b_ref: (1, Cout) f32 fused BN bias
    # o_ref: (nt, hout or ho, wo, Cout) f32 3x3-window max (W not yet decimated)
    y = jnp.dot(p_ref[...], w_ref[...], preferred_element_type=jnp.float32)
    y = jnp.maximum(y + b_ref[...], 0.0)                 # fused BN bias + ReLU
    y4 = y.reshape(nt, ho, wo, cout)                     # tile-preserving regroup

    # --- 3-tap max along H (leading axis); 0 is a safe identity post-ReLU ---
    zrow = jnp.zeros((nt, 1, wo, cout), jnp.float32)
    up = jnp.concatenate([zrow, y4[:, :ho - 1]], axis=1)      # value at h-1
    dn = jnp.concatenate([y4[:, 1:], zrow], axis=1)           # value at h+1
    h3 = jnp.maximum(jnp.maximum(y4, up), dn)

    # --- stride-2 decimation along H: pure leading-dim regroup, no data move --
    if decimate_h:
        h3 = h3.reshape(nt, hout, 2, wo, cout)[:, :, 0]

    # --- 3-tap max along W (sublane axis) via roll + boundary mask -----------
    widx = jax.lax.broadcasted_iota(jnp.int32, h3.shape, 2)
    left = jnp.where(widx == 0, 0.0, pltpu.roll(h3, shift=1, axis=2))
    right = jnp.where(widx == wo - 1, 0.0, pltpu.roll(h3, shift=wo - 1, axis=2))
    o_ref[...] = jnp.maximum(jnp.maximum(h3, left), right)


# ------------------------------ op wrapper ---------------------------------

def conv_bn_relu_pool(x_ndhwc, weight, scale, bias, stride, padding):
    """Fused Conv3d(bias=False)+BN(eval)+ReLU+MaxPool3d([1,3,3],[1,2,2],[0,1,1]).

    x_ndhwc: [N,T,H,W,Cin]; weight: [Cout,Cin,kT,kH,kW] (PyTorch layout).
    Returns channels-last pooled output [N, To, Hout, Wout, Cout]."""
    N, T, H, W, Cin = x_ndhwc.shape
    Cout, _, kT, kH, kW = weight.shape
    st, sh, sw = stride
    pt, ph, pw = padding

    To = (T + 2 * pt - kT) // st + 1
    Ho = (H + 2 * ph - kH) // sh + 1
    Wo = (W + 2 * pw - kW) // sw + 1
    Hout = (Ho - 1) // 2 + 1          # maxpool k=3, s=2, p=1
    Wout = (Wo - 1) // 2 + 1

    # im2col (tiny, bf16); K ordering is (kt, kh, kw, cin)
    xp = jnp.pad(x_ndhwc, ((0, 0), (pt, pt), (ph, ph), (pw, pw), (0, 0)))
    cols = []
    for dt in range(kT):
        for dh in range(kH):
            for dw in range(kW):
                cols.append(xp[:, dt:dt + st * (To - 1) + 1:st,
                               dh:dh + sh * (Ho - 1) + 1:sh,
                               dw:dw + sw * (Wo - 1) + 1:sw, :])
    K = kT * kH * kW * Cin
    M = N * To * Ho * Wo
    patches = jnp.concatenate(cols, axis=-1).reshape(M, K)

    # pad contraction dim to a sublane multiple; bf16 matmul operands
    Kp = ((K + 7) // 8) * 8
    patches = jnp.pad(patches, ((0, 0), (0, Kp - K))).astype(jnp.bfloat16)

    # weight -> (K, Cout) in (kt, kh, kw, cin) order, BN scale folded in
    w_mat = jnp.transpose(weight, (2, 3, 4, 1, 0)).reshape(K, Cout)
    w_mat = w_mat * scale.reshape(1, Cout)
    w_mat = jnp.pad(w_mat, ((0, Kp - K), (0, 0))).astype(jnp.bfloat16)
    b_row = bias.reshape(1, Cout).astype(jnp.float32)

    NT = N * To
    decimate_h = (Ho == 2 * Hout)
    Hk = Hout if decimate_h else Ho

    kernel = functools.partial(_stem_fused_kernel, nt=NT, ho=Ho, wo=Wo,
                               cout=Cout, hout=Hout, decimate_h=decimate_h)

    pooled = pl.pallas_call(
        kernel,
        out_shape=jax.ShapeDtypeStruct((NT, Hk, Wo, Cout), jnp.float32),
        grid=(1,),   # single resident step: no per-step pipeline overhead
        in_specs=[
            pl.BlockSpec((M, Kp), lambda i: (0, 0)),
            pl.BlockSpec((Kp, Cout), lambda i: (0, 0)),
            pl.BlockSpec((1, Cout), lambda i: (0, 0)),
        ],
        out_specs=pl.BlockSpec((NT, Hk, Wo, Cout), lambda i: (0, 0, 0, 0)),
        compiler_params=pltpu.CompilerParams(
            dimension_semantics=("arbitrary",)),
    )(patches, w_mat, b_row)

    if not decimate_h:                                  # rare fallback (odd Ho)
        pooled = pooled[:, 0:2 * (Hout - 1) + 1:2]
    # stride-2 W decimation on the tiny (KB) kernel output: pure strided copy
    pooled = pooled[:, :, 0:2 * (Wout - 1) + 1:2, :]
    return pooled.reshape(N, To, Hout, Wout, Cout)


# ------------------------- module-level forward -----------------------------

def init_stem_params(key, dim_in, dim_out, kernel):
    """Deterministic synthetic parameters matching nn.Conv3d + nn.BatchNorm3d."""
    kT, kH, kW = kernel
    kw_key, g_key, b_key, m_key, v_key = jax.random.split(key, 5)
    weight = 0.1 * jax.random.normal(kw_key, (dim_out, dim_in, kT, kH, kW),
                                     jnp.float32)
    gamma = 1.0 + 0.1 * jax.random.normal(g_key, (dim_out,), jnp.float32)
    beta = 0.1 * jax.random.normal(b_key, (dim_out,), jnp.float32)
    running_mean = 0.1 * jax.random.normal(m_key, (dim_out,), jnp.float32)
    running_var = jnp.abs(jax.random.normal(v_key, (dim_out,), jnp.float32)) + 0.5
    return dict(weight=weight, gamma=gamma, beta=beta,
                running_mean=running_mean, running_var=running_var)


@functools.partial(jax.jit, static_argnames=("kernel", "stride"))
def shufflenet_stem_forward(params, x_ncdhw, kernel, stride, eps=1e-5):
    """One pathway: Conv3d -> BatchNorm3d(eval) -> ReLU -> MaxPool3d, fused."""
    padding = tuple(k // 2 for k in kernel)
    scale = params["gamma"] / jnp.sqrt(params["running_var"] + eps)
    bias = params["beta"] - params["running_mean"] * scale
    x = jnp.transpose(x_ncdhw, (0, 2, 3, 4, 1))       # NCDHW -> NDHWC
    y = conv_bn_relu_pool(x, params["weight"], scale, bias, stride, padding)
    return jnp.transpose(y, (0, 4, 1, 2, 3))          # NDHWC -> NCDHW


def slowfast_shufflenet_stem_forward(params_list, xs, kernels, strides):
    assert len(xs) == len(params_list), "Input tensor pathway count mismatch"
    return [shufflenet_stem_forward(p, x, tuple(k), tuple(s))
            for p, x, k, s in zip(params_list, xs, kernels, strides)]


# ---------------------------------- main ------------------------------------

if __name__ == "__main__":
    key = jax.random.PRNGKey(0)
    # SlowFast stem config (small shapes): slow pathway kernel [1,3,3],
    # fast pathway kernel [3,3,3]; spatial stride 2; repeat == 1.
    dim_in = [3, 3]
    dim_out = [16, 8]
    kernels = [[1, 3, 3], [3, 3, 3]]
    strides = [[1, 2, 2], [1, 2, 2]]

    k0, k1, kx0, kx1 = jax.random.split(key, 4)
    params = [init_stem_params(k0, dim_in[0], dim_out[0], kernels[0]),
              init_stem_params(k1, dim_in[1], dim_out[1], kernels[1])]

    # PyTorch NCDHW inputs: slow path 4 frames, fast path 8 frames.
    x0 = jax.random.normal(kx0, (1, 3, 4, 16, 16), jnp.float32)
    x1 = jax.random.normal(kx1, (1, 3, 8, 16, 16), jnp.float32)

    outs = slowfast_shufflenet_stem_forward(params, [x0, x1], kernels, strides)
    outs = [jax.block_until_ready(o) for o in outs]

    # Conv: 16x16 -> 8x8 (stride 2, pad 1); MaxPool: 8x8 -> 4x4.
    assert outs[0].shape == (1, 16, 4, 4, 4), outs[0].shape
    assert outs[1].shape == (1, 8, 8, 4, 4), outs[1].shape
    assert all(bool(jnp.all(jnp.isfinite(o))) for o in outs)
    print("KERNEL_OK")
</pallas_src>

<mosaic_0001>
module attributes {stable_mosaic.version = 11 : i64} {
  func.func @_stem_fused_kernel(%arg0: i32, %arg1: memref<256x32xbf16, #tpu.memory_space<vmem>>, %arg2: memref<32x16xbf16, #tpu.memory_space<vmem>>, %arg3: memref<1x16xf32, #tpu.memory_space<vmem>>, %arg4: memref<4x4x8x16xf32, #tpu.memory_space<vmem>>) attributes {dimension_semantics = [#tpu.dimension_semantics<arbitrary>], iteration_bounds = array<i64: 1>, scalar_prefetch = 0 : i64, scratch_operands = 0 : i64, tpu.core_type = #tpu.core_type<tc>, window_params = [{pipeline_mode = #tpu.pipeline_mode<synchronous>, transform_indices = @transform_0, window_bounds = array<i64: 256, 32>}, {pipeline_mode = #tpu.pipeline_mode<synchronous>, transform_indices = @transform_1, window_bounds = array<i64: 32, 16>}, {pipeline_mode = #tpu.pipeline_mode<synchronous>, transform_indices = @transform_2, window_bounds = array<i64: 1, 16>}, {pipeline_mode = #tpu.pipeline_mode<synchronous>, transform_indices = @transform_3, window_bounds = array<i64: 4, 4, 8, 16>}]} {
    %c0 = arith.constant 0 : index
    %c0_0 = arith.constant 0 : index
    %0 = vector.load %arg1[%c0, %c0_0] : memref<256x32xbf16, #tpu.memory_space<vmem>>, vector<256x32xbf16>
    %c0_1 = arith.constant 0 : index
    %c0_2 = arith.constant 0 : index
    %1 = vector.load %arg2[%c0_1, %c0_2] : memref<32x16xbf16, #tpu.memory_space<vmem>>, vector<32x16xbf16>
    %cst = arith.constant dense<0.000000e+00> : vector<256x16xf32>
    %2 = tpu.matmul %0, %1, %cst {dimension_numbers = #tpu.dot_dimension_numbers<[1], [0], [0], [1], [0, 0, 1, 1], [], []>} : vector<256x32xbf16>, vector<32x16xbf16>, vector<256x16xf32> -> vector<256x16xf32>
    %c0_3 = arith.constant 0 : index
    %c0_4 = arith.constant 0 : index
    %3 = vector.load %arg3[%c0_3, %c0_4] : memref<1x16xf32, #tpu.memory_space<vmem>>, vector<1x16xf32>
    %4 = vector.broadcast %3 : vector<1x16xf32> to vector<256x16xf32>
    %5 = arith.addf %2, %4 : vector<256x16xf32>
    %cst_5 = arith.constant 0.000000e+00 : f32
    %6 = vector.broadcast %cst_5 : f32 to vector<256x16xf32>
    %7 = arith.maximumf %5, %6 : vector<256x16xf32>
    %8 = vector.shape_cast %7 : vector<256x16xf32> to vector<4x8x8x16xf32>
    %cst_6 = arith.constant 0.000000e+00 : f32
    %9 = vector.broadcast %cst_6 : f32 to vector<4x1x8x16xf32>
    %10 = vector.extract_strided_slice %8 {offsets = [0, 0, 0, 0], sizes = [4, 7, 8, 16], strides = [1, 1, 1, 1]} : vector<4x8x8x16xf32> to vector<4x7x8x16xf32>
    %11 = tpu.concatenate %9, %10 in 1 : vector<4x1x8x16xf32>, vector<4x7x8x16xf32> -> vector<4x8x8x16xf32>
    %12 = vector.extract_strided_slice %8 {offsets = [0, 1, 0, 0], sizes = [4, 7, 8, 16], strides = [1, 1, 1, 1]} : vector<4x8x8x16xf32> to vector<4x7x8x16xf32>
    %13 = tpu.concatenate %12, %9 in 1 : vector<4x7x8x16xf32>, vector<4x1x8x16xf32> -> vector<4x8x8x16xf32>
    %14 = arith.maximumf %8, %11 : vector<4x8x8x16xf32>
    %15 = arith.maximumf %14, %13 : vector<4x8x8x16xf32>
    %16 = vector.shape_cast %15 : vector<4x8x8x16xf32> to vector<4x4x2x8x16xf32>
    %17 = vector.extract_strided_slice %16 {offsets = [0, 0, 0, 0, 0], sizes = [4, 4, 1, 8, 16], strides = [1, 1, 1, 1, 1]} : vector<4x4x2x8x16xf32> to vector<4x4x1x8x16xf32>
    %18 = vector.shape_cast %17 : vector<4x4x1x8x16xf32> to vector<4x4x8x16xf32>
    %19 = tpu.iota {dimensions = array<i32: 2>} : vector<4x4x8x16xi32>
    %c0_i32 = arith.constant 0 : i32
    %20 = vector.broadcast %c0_i32 : i32 to vector<4x4x8x16xi32>
    %21 = arith.cmpi eq, %19, %20 : vector<4x4x8x16xi32>
    %c1_i32 = arith.constant 1 : i32
    %22 = tpu.dynamic_rotate %18 by %c1_i32 dim 2 : vector<4x4x8x16xf32>, i32 -> vector<4x4x8x16xf32>
    %cst_7 = arith.constant 0.000000e+00 : f32
    %23 = vector.broadcast %cst_7 : f32 to vector<4x4x8x16xf32>
    %24 = arith.select %21, %23, %22 : vector<4x4x8x16xi1>, vector<4x4x8x16xf32>
    %c7_i32 = arith.constant 7 : i32
    %25 = vector.broadcast %c7_i32 : i32 to vector<4x4x8x16xi32>
    %26 = arith.cmpi eq, %19, %25 : vector<4x4x8x16xi32>
    %c7_i32_8 = arith.constant 7 : i32
    %27 = tpu.dynamic_rotate %18 by %c7_i32_8 dim 2 : vector<4x4x8x16xf32>, i32 -> vector<4x4x8x16xf32>
    %cst_9 = arith.constant 0.000000e+00 : f32
    %28 = vector.broadcast %cst_9 : f32 to vector<4x4x8x16xf32>
    %29 = arith.select %26, %28, %27 : vector<4x4x8x16xi1>, vector<4x4x8x16xf32>
    %30 = arith.maximumf %18, %24 : vector<4x4x8x16xf32>
    %31 = arith.maximumf %30, %29 : vector<4x4x8x16xf32>
    %c0_10 = arith.constant 0 : index
    %c0_11 = arith.constant 0 : index
    %c0_12 = arith.constant 0 : index
    %c0_13 = arith.constant 0 : index
    %32 = vector.load %arg4[%c0_10, %c0_11, %c0_12, %c0_13] : memref<4x4x8x16xf32, #tpu.memory_space<vmem>>, vector<4x4x8x16xf32>
    tpu.vector_store %arg4[%c0_10, %c0_11, %c0_12, %c0_13], %31 {strides = array<i32>} : memref<4x4x8x16xf32, #tpu.memory_space<vmem>>, vector<4x4x8x16xf32>,
    return
  }
  func.func @transform_0(%arg0: i32) -> (i32, i32) {
    %c0_i32 = arith.constant 0 : i32
    %c0_i32_0 = arith.constant 0 : i32
    %c0_i32_1 = arith.constant 0 : i32
    return %c0_i32, %c0_i32_0 : i32, i32
  }
  func.func @transform_1(%arg0: i32) -> (i32, i32) {
    %c0_i32 = arith.constant 0 : i32
    %c0_i32_0 = arith.constant 0 : i32
    %c0_i32_1 = arith.constant 0 : i32
    return %c0_i32, %c0_i32_0 : i32, i32
  }
  func.func @transform_2(%arg0: i32) -> (i32, i32) {
    %c0_i32 = arith.constant 0 : i32
    %c0_i32_0 = arith.constant 0 : i32
    %c0_i32_1 = arith.constant 0 : i32
    return %c0_i32, %c0_i32_0 : i32, i32
  }
  func.func @transform_3(%arg0: i32) -> (i32, i32, i32, i32) {
    %c0_i32 = arith.constant 0 : i32
    %c0_i32_0 = arith.constant 0 : i32
    %c0_i32_1 = arith.constant 0 : i32
    %c0_i32_2 = arith.constant 0 : i32
    %c0_i32_3 = arith.constant 0 : i32
    return %c0_i32, %c0_i32_0, %c0_i32_1, %c0_i32_2 : i32, i32, i32, i32
  }
}

</mosaic_0001>

<llo_original>
// kernel: shufflenet_stem_forward.1
$region0: #{shufflenet_stem_forward.1}
  #allocation0 [shape = 'u32[]', space=smem, size = 0x4, offset = 0x4, fixed_abs, tag = 'smem constant byte address 0x4 - core index']
  #allocation1 [shape = 'u32[144,128]{1,0:T(1,128)}', space=vmem, size = 0x12000, scoped, tag = 'internal scratch']
  %s0 = inlined_call_operand.vmem [shape: bf16[256,32], index: 0, kind: input, shape index: {}]
  %s1 = inlined_call_operand.vmem [shape: bf16[32,16], index: 1, kind: input, shape index: {}]
  %s2 = inlined_call_operand.vmem [shape: f32[1,16], index: 2, kind: input, shape index: {}]
  %s3 = inlined_call_operand.vmem [shape: f32[4,4,8,16], index: 3, kind: output, shape index: {}]
  %s4 = sld [smem:[#allocation0]]
  $region22: #{shufflenet_stem_forward.1} parent=0
    _
  %s6 = ssub.s32 1, %s4
  %s7 = scalar_select 0, %s6, %s4
  // Predicated region
  $region2: #{shufflenet_stem_forward.1} parent=0 // pred_check
    _
  $region3: #{shufflenet_stem_forward.1} parent=0 // pred_check_branch
    %9 = sbr.rel (0) target = $region5
  $region4: #{shufflenet_stem_forward.1} parent=0 // pred_region
    _
  $region5: #{shufflenet_stem_forward.1} parent=0 // pred_fallthru
    _
  // Predicated region
  $region6: #{shufflenet_stem_forward.1} parent=0 // pred_check
    _
  $region7: #{shufflenet_stem_forward.1} parent=0 // pred_check_branch
    %11 = sbr.rel (0) target = $region9
  $region8: #{shufflenet_stem_forward.1} parent=0 // pred_region
    _
  $region9: #{shufflenet_stem_forward.1} parent=0 // pred_fallthru
    _
  // Predicated region
  $region10: #{shufflenet_stem_forward.1} parent=0 // pred_check
    _
  $region11: #{shufflenet_stem_forward.1} parent=0 // pred_check_branch
    %13 = sbr.rel (0) target = $region13
  $region12: #{shufflenet_stem_forward.1} parent=0 // pred_region
    _
  $region13: #{shufflenet_stem_forward.1} parent=0 // pred_fallthru
    _
  %v15 = vld [vmem:[%s0] sm:$0xf]
  %v16 = vld [vmem:[%s0 + $0x4] sm:$0xf]
  %v17 = vld [vmem:[%s0 + $0x8] sm:$0xf]
  %v18 = vld [vmem:[%s0 + $0xc] sm:$0xf]
  %v19 = vld [vmem:[%s0 + $0x10] sm:$0xf]
  %v20 = vld [vmem:[%s0 + $0x14] sm:$0xf]
  %v21 = vld [vmem:[%s0 + $0x18] sm:$0xf]
  %v22 = vld [vmem:[%s0 + $0x1c] sm:$0xf]
  %v23 = vld [vmem:[%s0 + $0x20] sm:$0xf]
  %v24 = vld [vmem:[%s0 + $0x24] sm:$0xf]
  %v25 = vld [vmem:[%s0 + $0x28] sm:$0xf]
  %v26 = vld [vmem:[%s0 + $0x2c] sm:$0xf]
  %v27 = vld [vmem:[%s0 + $0x30] sm:$0xf]
  %v28 = vld [vmem:[%s0 + $0x34] sm:$0xf]
  %v29 = vld [vmem:[%s0 + $0x38] sm:$0xf]
  %v30 = vld [vmem:[%s0 + $0x3c] sm:$0xf]
  %v31 = vld [vmem:[%s0 + $0x40] sm:$0xf]
  %v32 = vld [vmem:[%s0 + $0x44] sm:$0xf]
  %v33 = vld [vmem:[%s0 + $0x48] sm:$0xf]
  %v34 = vld [vmem:[%s0 + $0x4c] sm:$0xf]
  %v35 = vld [vmem:[%s0 + $0x50] sm:$0xf]
  %v36 = vld [vmem:[%s0 + $0x54] sm:$0xf]
  %v37 = vld [vmem:[%s0 + $0x58] sm:$0xf]
  %v38 = vld [vmem:[%s0 + $0x5c] sm:$0xf]
  %v39 = vld [vmem:[%s0 + $0x60] sm:$0xf]
  %v40 = vld [vmem:[%s0 + $0x64] sm:$0xf]
  %v41 = vld [vmem:[%s0 + $0x68] sm:$0xf]
  %v42 = vld [vmem:[%s0 + $0x6c] sm:$0xf]
  %v43 = vld [vmem:[%s0 + $0x70] sm:$0xf]
  %v44 = vld [vmem:[%s0 + $0x74] sm:$0xf]
  %v45 = vld [vmem:[%s0 + $0x78] sm:$0xf]
  %v46 = vld [vmem:[%s0 + $0x7c] sm:$0xf]
  %v47 = vld [vmem:[%s1] sm:$0xf]
  %v48 = vld [vmem:[%s1 + $0x4] sm:$0xf]
  %v49 = vld [vmem:[%s1 + $0x8] sm:$0xf]
  %v50 = vld [vmem:[%s1 + $0xc] sm:$0xf]
  %v51 = vld [vmem:[%s2] sm:$0x1]
  %v53 = vlaneseq
  %v54 = vshrl.u32 %v53, 7
  %v55 = vsub.s32 0, %v54
  %v56 = vrot.slane %v51, %v55
  %v90 = vunpack.c.l.b16 %v15
  %v91 = vunpack.c.l.b16 %v16
  %v92 = vunpack.c.l.b16 %v17
  %v93 = vunpack.c.l.b16 %v18
  %v94 = vunpack.c.l.b16 %v19
  %v95 = vunpack.c.l.b16 %v20
  %v96 = vunpack.c.l.b16 %v21
  %v97 = vunpack.c.l.b16 %v22
  %v98 = vunpack.c.l.b16 %v23
  %v99 = vunpack.c.l.b16 %v24
  %v100 = vunpack.c.l.b16 %v25
  %v101 = vunpack.c.l.b16 %v26
  %v102 = vunpack.c.l.b16 %v27
  %v103 = vunpack.c.l.b16 %v28
  %v104 = vunpack.c.l.b16 %v29
  %v105 = vunpack.c.l.b16 %v30
  %v106 = vunpack.c.l.b16 %v31
  %v107 = vunpack.c.l.b16 %v32
  %v108 = vunpack.c.l.b16 %v33
  %v109 = vunpack.c.l.b16 %v34
  %v110 = vunpack.c.l.b16 %v35
  %v111 = vunpack.c.l.b16 %v36
  %v112 = vunpack.c.l.b16 %v37
  %v113 = vunpack.c.l.b16 %v38
  %v114 = vunpack.c.l.b16 %v39
  %v115 = vunpack.c.l.b16 %v40
  %v116 = vunpack.c.l.b16 %v41
  %v117 = vunpack.c.l.b16 %v42
  %v118 = vunpack.c.l.b16 %v43
  %v119 = vunpack.c.l.b16 %v44
  %v120 = vunpack.c.l.b16 %v45
  %v121 = vunpack.c.l.b16 %v46
  %v122 = vpack.c.b16 %v91, %v90
  %v123 = vpack.c.b16 %v93, %v92
  %v124 = vpack.c.b16 %v95, %v94
  %v125 = vpack.c.b16 %v97, %v96
  %v126 = vpack.c.b16 %v99, %v98
  %v127 = vpack.c.b16 %v101, %v100
  %v128 = vpack.c.b16 %v103, %v102
  %v129 = vpack.c.b16 %v105, %v104
  %v130 = vpack.c.b16 %v107, %v106
  %v131 = vpack.c.b16 %v109, %v108
  %v132 = vpack.c.b16 %v111, %v110
  %v133 = vpack.c.b16 %v113, %v112
  %v134 = vpack.c.b16 %v115, %v114
  %v135 = vpack.c.b16 %v117, %v116
  %v136 = vpack.c.b16 %v119, %v118
  %v137 = vpack.c.b16 %v121, %v120
  %v142 = vunpack.c.l.b16 %v47
  %v143 = vunpack.c.l.b16 %v48
  %v144 = vunpack.c.l.b16 %v49
  %v145 = vunpack.c.l.b16 %v50
  %v146 = vpack.c.b16 %v143, %v142
  %v147 = vpack.c.b16 %v145, %v144
  %vm150 = vcmask 261120
  %v152 = vsel %vm150, %v122, 0
  %v155 = vsel %vm150, %v123, 0
  %v158 = vsel %vm150, %v124, 0
  %v161 = vsel %vm150, %v125, 0
  %v164 = vsel %vm150, %v126, 0
  %v167 = vsel %vm150, %v127, 0
  %v170 = vsel %vm150, %v128, 0
  %v173 = vsel %vm150, %v129, 0
  %v176 = vsel %vm150, %v130, 0
  %v179 = vsel %vm150, %v131, 0
  %v182 = vsel %vm150, %v132, 0
  %v185 = vsel %vm150, %v133, 0
  %v188 = vsel %vm150, %v134, 0
  %v191 = vsel %vm150, %v135, 0
  %v194 = vsel %vm150, %v136, 0
  %v197 = vsel %vm150, %v137, 0
  %199 = vmatprep.subr.bf16.mxu0 0
  %200 = vmatpush1.bf16.msra.mxu0 0
  %201 = vmatprep.subr.bf16.mxu0 0
  %202 = vmatpush1.bf16.msra.mxu0 0
  %203 = vmatprep.subr.bf16.mxu0 0
  %204 = vmatpush1.bf16.msra.mxu0 0
  %205 = vmatprep.subr.bf16.mxu0 0
  %206 = vmatpush1.bf16.msra.mxu0 0
  %207 = vmatprep.subr.bf16.mxu0 0
  %208 = vmatpush1.bf16.msra.mxu0 0
  %209 = vmatprep.subr.bf16.mxu0 0
  %210 = vmatpush1.bf16.msra.mxu0 0
  %211 = vmatprep.subr.bf16.mxu0 0
  %212 = vmatpush1.bf16.msra.mxu0 %v147
  %213 = vmatprep.subr.bf16.mxu0 0
  %214 = vmatpush1.bf16.msra.mxu0 %v146
  %215 = vmatprep.subr.bf16.mxu0 0
  %216 = vmatpush2.bf16.msra.mxu0 0
  %217 = vmatprep.subr.bf16.mxu0 0
  %218 = vmatpush2.bf16.msra.mxu0 0
  %219 = vmatprep.subr.bf16.mxu0 0
  %220 = vmatpush2.bf16.msra.mxu0 0
  %221 = vmatprep.subr.bf16.mxu0 0
  %222 = vmatpush2.bf16.msra.mxu0 0
  %223 = vmatprep.subr.bf16.mxu0 0
  %224 = vmatpush2.bf16.msra.mxu0 0
  %225 = vmatprep.subr.bf16.mxu0 0
  %226 = vmatpush2.bf16.msra.mxu0 0
  %227 = vmatprep.subr.bf16.mxu0 0
  %228 = vmatpush2.bf16.msra.mxu0 0
  %229 = vmatprep.subr.bf16.mxu0 0
  %230 = vmatpush2.bf16.msra.mxu0 0
  %231 = vmatprep.mubr.bf16.mxu0 0
  %232 = vmatmul.mubr.bf16.gmra.mxu0 %v152
  %v233 = vpop.f32.mrf.mxu0
  %v234 = vadd.f32 %v56, %v233
  %v235 = vpop.f32.mrf.mxu0
  %v236 = vpop.f32.mrf.mxu0
  %v237 = vadd.f32 %v56, %v236
  %v238 = vpop.f32.mrf.mxu0
  %239 = vmatprep.mubr.bf16.mxu0 0
  %240 = vmatmul.mubr.bf16.gmra.mxu0 %v155
  %v241 = vpop.f32.mrf.mxu0
  %v242 = vadd.f32 %v56, %v241
  %v243 = vpop.f32.mrf.mxu0
  %v244 = vpop.f32.mrf.mxu0
  %v245 = vadd.f32 %v56, %v244
  %v246 = vpop.f32.mrf.mxu0
  %247 = vmatprep.mubr.bf16.mxu0 0
  %248 = vmatmul.mubr.bf16.gmra.mxu0 %v158
  %v249 = vpop.f32.mrf.mxu0
  %v250 = vadd.f32 %v56, %v249
  %v251 = vpop.f32.mrf.mxu0
  %v252 = vpop.f32.mrf.mxu0
  %v253 = vadd.f32 %v56, %v252
  %v254 = vpop.f32.mrf.mxu0
  %255 = vmatprep.mubr.bf16.mxu0 0
  %256 = vmatmul.mubr.bf16.gmra.mxu0 %v161
  %v257 = vpop.f32.mrf.mxu0
  %v258 = vadd.f32 %v56, %v257
  %v259 = vpop.f32.mrf.mxu0
  %v260 = vpop.f32.mrf.mxu0
  %v261 = vadd.f32 %v56, %v260
  %v262 = vpop.f32.mrf.mxu0
  %263 = vmatprep.mubr.bf16.mxu0 0
  %264 = vmatmul.mubr.bf16.gmra.mxu0 %v164
  %v265 = vpop.f32.mrf.mxu0
  %v266 = vadd.f32 %v56, %v265
  %v267 = vpop.f32.mrf.mxu0
  %v268 = vpop.f32.mrf.mxu0
  %v269 = vadd.f32 %v56, %v268
  %v270 = vpop.f32.mrf.mxu0
  %271 = vmatprep.mubr.bf16.mxu0 0
  %272 = vmatmul.mubr.bf16.gmra.mxu0 %v167
  %v273 = vpop.f32.mrf.mxu0
  %v274 = vadd.f32 %v56, %v273
  %v275 = vpop.f32.mrf.mxu0
  %v276 = vpop.f32.mrf.mxu0
  %v277 = vadd.f32 %v56, %v276
  %v278 = vpop.f32.mrf.mxu0
  %279 = vmatprep.mubr.bf16.mxu0 0
  %280 = vmatmul.mubr.bf16.gmra.mxu0 %v170
  %v281 = vpop.f32.mrf.mxu0
  %v282 = vadd.f32 %v56, %v281
  %v283 = vpop.f32.mrf.mxu0
  %v284 = vpop.f32.mrf.mxu0
  %v285 = vadd.f32 %v56, %v284
  %v286 = vpop.f32.mrf.mxu0
  %287 = vmatprep.mubr.bf16.mxu0 0
  %288 = vmatmul.mubr.bf16.gmra.mxu0 %v173
  %v289 = vpop.f32.mrf.mxu0
  %v290 = vadd.f32 %v56, %v289
  %v291 = vpop.f32.mrf.mxu0
  %v292 = vpop.f32.mrf.mxu0
  %v293 = vadd.f32 %v56, %v292
  %v294 = vpop.f32.mrf.mxu0
  %295 = vmatprep.mubr.bf16.mxu0 0
  %296 = vmatmul.mubr.bf16.gmra.mxu0 %v176
  %v297 = vpop.f32.mrf.mxu0
  %v298 = vadd.f32 %v56, %v297
  %v299 = vpop.f32.mrf.mxu0
  %v300 = vpop.f32.mrf.mxu0
  %v301 = vadd.f32 %v56, %v300
  %v302 = vpop.f32.mrf.mxu0
  %303 = vmatprep.mubr.bf16.mxu0 0
  %304 = vmatmul.mubr.bf16.gmra.mxu0 %v179
  %v305 = vpop.f32.mrf.mxu0
  %v306 = vadd.f32 %v56, %v305
  %v307 = vpop.f32.mrf.mxu0
  %v308 = vpop.f32.mrf.mxu0
  %v309 = vadd.f32 %v56, %v308
  %v310 = vpop.f32.mrf.mxu0
  %311 = vmatprep.mubr.bf16.mxu0 0
  %312 = vmatmul.mubr.bf16.gmra.mxu0 %v182
  %v313 = vpop.f32.mrf.mxu0
  %v314 = vadd.f32 %v56, %v313
  %v315 = vpop.f32.mrf.mxu0
  %v316 = vpop.f32.mrf.mxu0
  %v317 = vadd.f32 %v56, %v316
  %v318 = vpop.f32.mrf.mxu0
  %319 = vmatprep.mubr.bf16.mxu0 0
  %320 = vmatmul.mubr.bf16.gmra.mxu0 %v185
  %v321 = vpop.f32.mrf.mxu0
  %v322 = vadd.f32 %v56, %v321
  %v323 = vpop.f32.mrf.mxu0
  %v324 = vpop.f32.mrf.mxu0
  %v325 = vadd.f32 %v56, %v324
  %v326 = vpop.f32.mrf.mxu0
  %327 = vmatprep.mubr.bf16.mxu0 0
  %328 = vmatmul.mubr.bf16.gmra.mxu0 %v188
  %v329 = vpop.f32.mrf.mxu0
  %v330 = vadd.f32 %v56, %v329
  %v331 = vpop.f32.mrf.mxu0
  %v332 = vpop.f32.mrf.mxu0
  %v333 = vadd.f32 %v56, %v332
  %v334 = vpop.f32.mrf.mxu0
  %335 = vmatprep.mubr.bf16.mxu0 0
  %336 = vmatmul.mubr.bf16.gmra.mxu0 %v191
  %v337 = vpop.f32.mrf.mxu0
  %v338 = vadd.f32 %v56, %v337
  %v339 = vpop.f32.mrf.mxu0
  %v340 = vpop.f32.mrf.mxu0
  %v341 = vadd.f32 %v56, %v340
  %v342 = vpop.f32.mrf.mxu0
  %343 = vmatprep.mubr.bf16.mxu0 0
  %344 = vmatmul.mubr.bf16.gmra.mxu0 %v194
  %v345 = vpop.f32.mrf.mxu0
  %v346 = vadd.f32 %v56, %v345
  %v347 = vpop.f32.mrf.mxu0
  %v348 = vpop.f32.mrf.mxu0
  %v349 = vadd.f32 %v56, %v348
  %v350 = vpop.f32.mrf.mxu0
  %351 = vmatprep.mubr.bf16.mxu0 0
  %352 = vmatmul.mubr.bf16.gmra.mxu0 %v197
  %v353 = vpop.f32.mrf.mxu0
  %v354 = vadd.f32 %v56, %v353
  %v355 = vpop.f32.mrf.mxu0
  %v356 = vpop.f32.mrf.mxu0
  %v357 = vadd.f32 %v56, %v356
  %v358 = vpop.f32.mrf.mxu0
  %359 = vdwg.mxu0
  %v360 = vmax.f32 %v234, 0.0
  %v361 = vmax.f32 %v237, 0.0
  %v362 = vmax.f32 %v242, 0.0
  %v363 = vmax.f32 %v245, 0.0
  %v364 = vmax.f32 %v250, 0.0
  %v365 = vmax.f32 %v253, 0.0
  %v366 = vmax.f32 %v258, 0.0
  %v367 = vmax.f32 %v261, 0.0
  %v368 = vmax.f32 %v266, 0.0
  %v369 = vmax.f32 %v269, 0.0
  %v370 = vmax.f32 %v274, 0.0
  %v371 = vmax.f32 %v277, 0.0
  %v372 = vmax.f32 %v282, 0.0
  %v373 = vmax.f32 %v285, 0.0
  %v374 = vmax.f32 %v290, 0.0
  %v375 = vmax.f32 %v293, 0.0
  %v376 = vmax.f32 %v298, 0.0
  %v377 = vmax.f32 %v301, 0.0
  %v378 = vmax.f32 %v306, 0.0
  %v379 = vmax.f32 %v309, 0.0
  %v380 = vmax.f32 %v314, 0.0
  %v381 = vmax.f32 %v317, 0.0
  %v382 = vmax.f32 %v322, 0.0
  %v383 = vmax.f32 %v325, 0.0
  %v384 = vmax.f32 %v330, 0.0
  %v385 = vmax.f32 %v333, 0.0
  %v386 = vmax.f32 %v338, 0.0
  %v387 = vmax.f32 %v341, 0.0
  %v388 = vmax.f32 %v346, 0.0
  %v389 = vmax.f32 %v349, 0.0
  %v390 = vmax.f32 %v354, 0.0
  %v391 = vmax.f32 %v357, 0.0
  %v392 = vmax.f32 %v360, 0.0
  %v393 = vmax.f32 %v362, %v361
  %v394 = vmax.f32 %v364, %v363
  %v395 = vmax.f32 %v366, %v365
  %v396 = vmax.f32 %v368, 0.0
  %v397 = vmax.f32 %v370, %v369
  %v398 = vmax.f32 %v372, %v371
  %v399 = vmax.f32 %v374, %v373
  %v400 = vmax.f32 %v376, 0.0
  %v401 = vmax.f32 %v378, %v377
  %v402 = vmax.f32 %v380, %v379
  %v403 = vmax.f32 %v382, %v381
  %v404 = vmax.f32 %v384, 0.0
  %v405 = vmax.f32 %v386, %v385
  %v406 = vmax.f32 %v388, %v387
  %v407 = vmax.f32 %v390, %v389
  %v408 = vmax.f32 %v392, %v361
  %v409 = vmax.f32 %v393, %v363
  %v410 = vmax.f32 %v394, %v365
  %v411 = vmax.f32 %v395, %v367
  %v412 = vmax.f32 %v396, %v369
  %v413 = vmax.f32 %v397, %v371
  %v414 = vmax.f32 %v398, %v373
  %v415 = vmax.f32 %v399, %v375
  %v416 = vmax.f32 %v400, %v377
  %v417 = vmax.f32 %v401, %v379
  %v418 = vmax.f32 %v402, %v381
  %v419 = vmax.f32 %v403, %v383
  %v420 = vmax.f32 %v404, %v385
  %v421 = vmax.f32 %v405, %v387
  %v422 = vmax.f32 %v406, %v389
  %v423 = vmax.f32 %v407, %v391
  %v424 = vlaneseq
  %v425 = vshrl.u32 %v424, 7
  %vm426 = vcmp.eq.s32.totalorder %v425, 0
  %v427 = vrot.slane %v408, 7
  %v428 = vrot.slane %v409, 7
  %v429 = vrot.slane %v410, 7
  %v430 = vrot.slane %v411, 7
  %v431 = vrot.slane %v412, 7
  %v432 = vrot.slane %v413, 7
  %v433 = vrot.slane %v414, 7
  %v434 = vrot.slane %v415, 7
  %v435 = vrot.slane %v416, 7
  %v436 = vrot.slane %v417, 7
  %v437 = vrot.slane %v418, 7
  %v438 = vrot.slane %v419, 7
  %v439 = vrot.slane %v420, 7
  %v440 = vrot.slane %v421, 7
  %v441 = vrot.slane %v422, 7
  %v442 = vrot.slane %v423, 7
  %v443 = vsel %vm426, 0.0, %v427
  %v444 = vsel %vm426, 0.0, %v428
  %v445 = vsel %vm426, 0.0, %v429
  %v446 = vsel %vm426, 0.0, %v430
  %v447 = vsel %vm426, 0.0, %v431
  %v448 = vsel %vm426, 0.0, %v432
  %v449 = vsel %vm426, 0.0, %v433
  %v450 = vsel %vm426, 0.0, %v434
  %v451 = vsel %vm426, 0.0, %v435
  %v452 = vsel %vm426, 0.0, %v436
  %v453 = vsel %vm426, 0.0, %v437
  %v454 = vsel %vm426, 0.0, %v438
  %v455 = vsel %vm426, 0.0, %v439
  %v456 = vsel %vm426, 0.0, %v440
  %v457 = vsel %vm426, 0.0, %v441
  %v458 = vsel %vm426, 0.0, %v442
  %vm459 = vcmp.eq.s32.totalorder %v425, 7
  %v460 = vrot.slane %v408, 1
  %v461 = vrot.slane %v409, 1
  %v462 = vrot.slane %v410, 1
  %v463 = vrot.slane %v411, 1
  %v464 = vrot.slane %v412, 1
  %v465 = vrot.slane %v413, 1
  %v466 = vrot.slane %v414, 1
  %v467 = vrot.slane %v415, 1
  %v468 = vrot.slane %v416, 1
  %v469 = vrot.slane %v417, 1
  %v470 = vrot.slane %v418, 1
  %v471 = vrot.slane %v419, 1
  %v472 = vrot.slane %v420, 1
  %v473 = vrot.slane %v421, 1
  %v474 = vrot.slane %v422, 1
  %v475 = vrot.slane %v423, 1
  %v476 = vsel %vm459, 0.0, %v460
  %v477 = vsel %vm459, 0.0, %v461
  %v478 = vsel %vm459, 0.0, %v462
  %v479 = vsel %vm459, 0.0, %v463
  %v480 = vsel %vm459, 0.0, %v464
  %v481 = vsel %vm459, 0.0, %v465
  %v482 = vsel %vm459, 0.0, %v466
  %v483 = vsel %vm459, 0.0, %v467
  %v484 = vsel %vm459, 0.0, %v468
  %v485 = vsel %vm459, 0.0, %v469
  %v486 = vsel %vm459, 0.0, %v470
  %v487 = vsel %vm459, 0.0, %v471
  %v488 = vsel %vm459, 0.0, %v472
  %v489 = vsel %vm459, 0.0, %v473
  %v490 = vsel %vm459, 0.0, %v474
  %v491 = vsel %vm459, 0.0, %v475
  %v492 = vmax.f32 %v408, %v443
  %v493 = vmax.f32 %v409, %v444
  %v494 = vmax.f32 %v410, %v445
  %v495 = vmax.f32 %v411, %v446
  %v496 = vmax.f32 %v412, %v447
  %v497 = vmax.f32 %v413, %v448
  %v498 = vmax.f32 %v414, %v449
  %v499 = vmax.f32 %v415, %v450
  %v500 = vmax.f32 %v416, %v451
  %v501 = vmax.f32 %v417, %v452
  %v502 = vmax.f32 %v418, %v453
  %v503 = vmax.f32 %v419, %v454
  %v504 = vmax.f32 %v420, %v455
  %v505 = vmax.f32 %v421, %v456
  %v506 = vmax.f32 %v422, %v457
  %v507 = vmax.f32 %v423, %v458
  %v508 = vmax.f32 %v492, %v476
  %v509 = vmax.f32 %v493, %v477
  %v510 = vmax.f32 %v494, %v478
  %v511 = vmax.f32 %v495, %v479
  %v512 = vmax.f32 %v496, %v480
  %v513 = vmax.f32 %v497, %v481
  %v514 = vmax.f32 %v498, %v482
  %v515 = vmax.f32 %v499, %v483
  %v516 = vmax.f32 %v500, %v484
  %v517 = vmax.f32 %v501, %v485
  %v518 = vmax.f32 %v502, %v486
  %v519 = vmax.f32 %v503, %v487
  %v520 = vmax.f32 %v504, %v488
  %v521 = vmax.f32 %v505, %v489
  %v522 = vmax.f32 %v506, %v490
  %v523 = vmax.f32 %v507, %v491
  %vm524 = vcmask 130048
  %525 = vst.msk [vmem:[%s3] sm:$0xff] %vm524, %v508
  %526 = vst.msk [vmem:[%s3 + $0x8] sm:$0xff] %vm524, %v509
  %527 = vst.msk [vmem:[%s3 + $0x10] sm:$0xff] %vm524, %v510
  %528 = vst.msk [vmem:[%s3 + $0x18] sm:$0xff] %vm524, %v511
  %529 = vst.msk [vmem:[%s3 + $0x20] sm:$0xff] %vm524, %v512
  %530 = vst.msk [vmem:[%s3 + $0x28] sm:$0xff] %vm524, %v513
  %531 = vst.msk [vmem:[%s3 + $0x30] sm:$0xff] %vm524, %v514
  %532 = vst.msk [vmem:[%s3 + $0x38] sm:$0xff] %vm524, %v515
  %533 = vst.msk [vmem:[%s3 + $0x40] sm:$0xff] %vm524, %v516
  %534 = vst.msk [vmem:[%s3 + $0x48] sm:$0xff] %vm524, %v517
  %535 = vst.msk [vmem:[%s3 + $0x50] sm:$0xff] %vm524, %v518
  %536 = vst.msk [vmem:[%s3 + $0x58] sm:$0xff] %vm524, %v519
  %537 = vst.msk [vmem:[%s3 + $0x60] sm:$0xff] %vm524, %v520
  %538 = vst.msk [vmem:[%s3 + $0x68] sm:$0xff] %vm524, %v521
  %539 = vst.msk [vmem:[%s3 + $0x70] sm:$0xff] %vm524, %v522
  %540 = vst.msk [vmem:[%s3 + $0x78] sm:$0xff] %vm524, %v523
  // Predicated region
  $region14: #{shufflenet_stem_forward.1} parent=0 // pred_check
    _
  $region15: #{shufflenet_stem_forward.1} parent=0 // pred_check_branch
    %542 = sbr.rel (0) target = $region17
  $region16: #{shufflenet_stem_forward.1} parent=0 // pred_region
    _
  $region17: #{shufflenet_stem_forward.1} parent=0 // pred_fallthru
    _
  // Predicated region
  $region18: #{shufflenet_stem_forward.1} parent=0 // pred_check
    _
  $region19: #{shufflenet_stem_forward.1} parent=0 // pred_check_branch
    %544 = sbr.rel (0) target = $region21
  $region20: #{shufflenet_stem_forward.1} parent=0 // pred_region
    _
  $region21: #{shufflenet_stem_forward.1} parent=0 // pred_fallthru
    _

</llo_original>
